<compile_context>
chip_gen: v5e
topology: v5e:2x2
jax: 0.10.0
libtpu: 0.0.40
codegen_flags: <defaults>
</compile_context>

<pallas_src>
import jax
import jax.numpy as jnp
from jax.experimental import pallas as pl
from jax.experimental.pallas import tpu as pltpu


def _round_up(n, m):
    return ((n + m - 1) // m) * m


# -----------------------------------------------------------------------------
# Fused kernel: [Linear -> ReLU -> Dropout] * num_hidden -> Linear
# -----------------------------------------------------------------------------
def _make_fused_mlp_kernel(num_hidden, dropout_p):
    dropout_p = float(dropout_p)
    if 0.0 < dropout_p < 1.0:
        keep_scale = 1.0 / (1.0 - dropout_p)
        # keep element iff uniform-uint32 >= p * 2^32   =>   P(keep) = 1 - p
        threshold = min(int(round(dropout_p * (2.0 ** 32))), 2 ** 32 - 1)
    else:
        keep_scale = 1.0
        threshold = 0

    def kernel(*refs):
        # refs = x, (w, b, bits) * num_hidden, w_out, b_out, o
        x_ref = refs[0]
        o_ref = refs[-1]

        h = x_ref[...]
        i = 1
        for _ in range(num_hidden):
            w_ref, b_ref, bits_ref = refs[i], refs[i + 1], refs[i + 2]
            i += 3
            y = jnp.dot(h, w_ref[...], preferred_element_type=jnp.float32)
            y = jnp.maximum(y + b_ref[...], 0.0)                 # Linear + ReLU
            if dropout_p >= 1.0:                                 # degenerate p
                h = jnp.zeros_like(y)
            elif dropout_p > 0.0:                                # inverted dropout
                keep = bits_ref[...] >= jnp.uint32(threshold)    # integer compare
                h = jnp.where(keep, y * keep_scale, 0.0)
            else:                                                # p == 0: no-op
                h = y

        w_ref, b_ref = refs[i], refs[i + 1]
        y = jnp.dot(h, w_ref[...], preferred_element_type=jnp.float32)
        o_ref[...] = (y + b_ref[...]).astype(o_ref.dtype)

    return kernel


# -----------------------------------------------------------------------------
# Wrapper: pad to lane-dense shapes, run N Monte-Carlo samples in one launch
# -----------------------------------------------------------------------------
def mcdropout_linear_mc_forward(params, x, key, dropout_p=0.5, num_samples=16):
    """Returns (num_samples, batch, outputs): independent stochastic passes."""
    B, d_in = x.shape
    dims = [d_in] + [w.shape[1] for (w, _) in params]
    num_hidden = len(params) - 1

    B_pad = _round_up(B, 8)
    dpad = [_round_up(d, 128) for d in dims]

    # zero-padded input
    xp = jnp.zeros((B_pad, dpad[0]), x.dtype).at[:B, :d_in].set(x)

    inputs = [xp]
    in_specs = [pl.BlockSpec((B_pad, dpad[0]), lambda s: (0, 0))]

    keys = jax.random.split(key, max(num_hidden, 1))
    for li in range(num_hidden):
        w, b = params[li]
        di, do = dims[li], dims[li + 1]
        dpi, dpo = dpad[li], dpad[li + 1]
        wp = jnp.zeros((dpi, dpo), w.dtype).at[:di, :do].set(w)
        bp = jnp.zeros((1, dpo), w.dtype).at[:, :do].set(jnp.reshape(b, (1, do)))
        # independent dropout bits per MC sample / layer / element
        bits = jax.random.bits(keys[li], (num_samples, B_pad, dpo), jnp.uint32)
        inputs += [wp, bp, bits]
        in_specs += [
            pl.BlockSpec((dpi, dpo), lambda s: (0, 0)),          # resident weight
            pl.BlockSpec((1, dpo), lambda s: (0, 0)),            # resident bias
            pl.BlockSpec((None, B_pad, dpo), lambda s: (s, 0, 0)),  # per-sample bits
        ]

    w, b = params[-1]
    di, do = dims[-2], dims[-1]
    dpi, dpo = dpad[-2], dpad[-1]
    wp = jnp.zeros((dpi, dpo), w.dtype).at[:di, :do].set(w)
    bp = jnp.zeros((1, dpo), w.dtype).at[:, :do].set(jnp.reshape(b, (1, do)))
    inputs += [wp, bp]
    in_specs += [
        pl.BlockSpec((dpi, dpo), lambda s: (0, 0)),
        pl.BlockSpec((1, dpo), lambda s: (0, 0)),
    ]

    # TODO(synk): at realistic sizes (B/D in the thousands) add BlockSpec tiling
    # over M/N ("parallel") and K ("arbitrary") with a f32 VMEM accumulator
    # instead of keeping whole arrays resident; re-budget tiles for v7x's 64 MiB VMEM.
    kernel = _make_fused_mlp_kernel(num_hidden, dropout_p)
    out = pl.pallas_call(
        kernel,
        out_shape=jax.ShapeDtypeStruct((num_samples, B_pad, dpad[-1]), x.dtype),
        grid=(num_samples,),
        in_specs=in_specs,
        out_specs=pl.BlockSpec((None, B_pad, dpad[-1]), lambda s: (s, 0, 0)),
        compiler_params=pltpu.CompilerParams(dimension_semantics=("parallel",)),
    )(*inputs)

    return out[:, :B, :dims[-1]]


def mcdropout_linear_forward(params, x, key, dropout_p=0.5):
    """One stochastic forward pass: same shape semantics as the PyTorch module."""
    return mcdropout_linear_mc_forward(params, x, key, dropout_p, num_samples=1)[0]


# -----------------------------------------------------------------------------
# Parameter init (PyTorch nn.Linear-style U(-1/sqrt(fan_in), 1/sqrt(fan_in)))
# -----------------------------------------------------------------------------
def init_mcdropout_linear_params(key, inputs, outputs, hidden_dim):
    params = []
    dims = [inputs] + list(hidden_dim) + [outputs]
    for i in range(len(dims) - 1):
        fan_in, fan_out = dims[i], dims[i + 1]
        key, kw, kb = jax.random.split(key, 3)
        bound = 1.0 / (fan_in ** 0.5)
        w = jax.random.uniform(kw, (fan_in, fan_out), jnp.float32, -bound, bound)
        b = jax.random.uniform(kb, (fan_out,), jnp.float32, -bound, bound)
        params.append((w, b))
    return params


def _mlp_reference_no_dropout(params, x):
    h = x
    for w, b in params[:-1]:
        h = jnp.maximum(h @ w + b, 0.0)
    w, b = params[-1]
    return h @ w + b


# -----------------------------------------------------------------------------
# Main
# -----------------------------------------------------------------------------
if __name__ == "__main__":
    key = jax.random.PRNGKey(0)
    k_x, k_param, k_drop, k_drop2 = jax.random.split(key, 4)

    batch = 8
    inputs = 32
    hidden_dim = (64, 32)
    outputs = 8
    dropout_p = 0.5
    num_samples = 16

    x = jax.random.normal(k_x, (batch, inputs), dtype=jnp.float32)
    params = init_mcdropout_linear_params(k_param, inputs, outputs, hidden_dim)

    # 16 independent MC-dropout passes in a single fused kernel launch.
    mc_out = mcdropout_linear_mc_forward(params, x, k_drop, dropout_p, num_samples)
    mc_out = jax.block_until_ready(mc_out)
    assert mc_out.shape == (num_samples, batch, outputs), mc_out.shape
    assert mc_out.dtype == jnp.float32
    assert bool(jnp.all(jnp.isfinite(mc_out)))
    # masks must differ across MC samples
    assert bool(jnp.any(mc_out[0] != mc_out[1]))

    # Single pass (matches the original module's forward output shape).
    single = jax.block_until_ready(
        mcdropout_linear_forward(params, x, k_drop2, dropout_p))
    assert single.shape == (batch, outputs)
    assert bool(jnp.all(jnp.isfinite(single)))

    # p = 0 sanity check against a pure-JAX reference (deterministic path).
    det = jax.block_until_ready(
        mcdropout_linear_mc_forward(params, x, k_drop, 0.0, 2))
    ref = _mlp_reference_no_dropout(params, x)
    assert bool(jnp.allclose(det[0], ref, rtol=5e-2, atol=5e-2))
    assert bool(jnp.allclose(det[0], det[1]))

    print("KERNEL_OK")
</pallas_src>

<mosaic_0001>
module attributes {stable_mosaic.version = 11 : i64} {
  func.func @kernel(%arg0: i32, %arg1: memref<8x128xf32, #tpu.memory_space<vmem>>, %arg2: memref<128x128xf32, #tpu.memory_space<vmem>>, %arg3: memref<1x128xf32, #tpu.memory_space<vmem>>, %arg4: memref<1x8x128xi32, #tpu.memory_space<vmem>>, %arg5: memref<128x128xf32, #tpu.memory_space<vmem>>, %arg6: memref<1x128xf32, #tpu.memory_space<vmem>>, %arg7: memref<1x8x128xi32, #tpu.memory_space<vmem>>, %arg8: memref<128x128xf32, #tpu.memory_space<vmem>>, %arg9: memref<1x128xf32, #tpu.memory_space<vmem>>, %arg10: memref<1x8x128xf32, #tpu.memory_space<vmem>>) attributes {dimension_semantics = [#tpu.dimension_semantics<parallel>], iteration_bounds = array<i64: 16>, scalar_prefetch = 0 : i64, scratch_operands = 0 : i64, tpu.core_type = #tpu.core_type<tc>, window_params = [{pipeline_mode = #tpu.pipeline_mode<synchronous>, transform_indices = @transform_0, window_bounds = array<i64: 8, 128>}, {pipeline_mode = #tpu.pipeline_mode<synchronous>, transform_indices = @transform_1, window_bounds = array<i64: 128, 128>}, {pipeline_mode = #tpu.pipeline_mode<synchronous>, transform_indices = @transform_2, window_bounds = array<i64: 1, 128>}, {transform_indices = @transform_3, window_bounds = array<i64: 1, 8, 128>}, {pipeline_mode = #tpu.pipeline_mode<synchronous>, transform_indices = @transform_4, window_bounds = array<i64: 128, 128>}, {pipeline_mode = #tpu.pipeline_mode<synchronous>, transform_indices = @transform_5, window_bounds = array<i64: 1, 128>}, {transform_indices = @transform_6, window_bounds = array<i64: 1, 8, 128>}, {pipeline_mode = #tpu.pipeline_mode<synchronous>, transform_indices = @transform_7, window_bounds = array<i64: 128, 128>}, {pipeline_mode = #tpu.pipeline_mode<synchronous>, transform_indices = @transform_8, window_bounds = array<i64: 1, 128>}, {transform_indices = @transform_9, window_bounds = array<i64: 1, 8, 128>}]} {
    %c0 = arith.constant 0 : index
    %c0_0 = arith.constant 0 : index
    %0 = vector.load %arg1[%c0, %c0_0] : memref<8x128xf32, #tpu.memory_space<vmem>>, vector<8x128xf32>
    %c0_1 = arith.constant 0 : index
    %c0_2 = arith.constant 0 : index
    %1 = vector.load %arg2[%c0_1, %c0_2] : memref<128x128xf32, #tpu.memory_space<vmem>>, vector<128x128xf32>
    %cst = arith.constant dense<0.000000e+00> : vector<8x128xf32>
    %2 = tpu.matmul %0, %1, %cst {dimension_numbers = #tpu.dot_dimension_numbers<[1], [0], [0], [1], [0, 0, 1, 1], [], []>} : vector<8x128xf32>, vector<128x128xf32>, vector<8x128xf32> -> vector<8x128xf32>
    %c0_3 = arith.constant 0 : index
    %c0_4 = arith.constant 0 : index
    %3 = vector.load %arg3[%c0_3, %c0_4] : memref<1x128xf32, #tpu.memory_space<vmem>>, vector<1x128xf32>
    %4 = vector.broadcast %3 : vector<1x128xf32> to vector<8x128xf32>
    %5 = arith.addf %2, %4 : vector<8x128xf32>
    %cst_5 = arith.constant 0.000000e+00 : f32
    %6 = vector.broadcast %cst_5 : f32 to vector<8x128xf32>
    %7 = arith.maximumf %5, %6 : vector<8x128xf32>
    %c0_6 = arith.constant 0 : index
    %c0_7 = arith.constant 0 : index
    %c0_8 = arith.constant 0 : index
    %8 = vector.load %arg4[%c0_6, %c0_7, %c0_8] : memref<1x8x128xi32, #tpu.memory_space<vmem>>, vector<1x8x128xi32>
    %9 = vector.shape_cast %8 : vector<1x8x128xi32> to vector<8x128xi32>
    %c-2147483648_i32 = arith.constant -2147483648 : i32
    %10 = vector.broadcast %c-2147483648_i32 : i32 to vector<8x128xi32>
    %11 = arith.cmpi uge, %9, %10 : vector<8x128xi32>
    %cst_9 = arith.constant 2.000000e+00 : f32
    %12 = vector.broadcast %cst_9 : f32 to vector<8x128xf32>
    %13 = arith.mulf %7, %12 : vector<8x128xf32>
    %cst_10 = arith.constant 0.000000e+00 : f32
    %14 = vector.broadcast %cst_10 : f32 to vector<8x128xf32>
    %15 = arith.select %11, %13, %14 : vector<8x128xi1>, vector<8x128xf32>
    %c0_11 = arith.constant 0 : index
    %c0_12 = arith.constant 0 : index
    %16 = vector.load %arg5[%c0_11, %c0_12] : memref<128x128xf32, #tpu.memory_space<vmem>>, vector<128x128xf32>
    %cst_13 = arith.constant dense<0.000000e+00> : vector<8x128xf32>
    %17 = tpu.matmul %15, %16, %cst_13 {dimension_numbers = #tpu.dot_dimension_numbers<[1], [0], [0], [1], [0, 0, 1, 1], [], []>} : vector<8x128xf32>, vector<128x128xf32>, vector<8x128xf32> -> vector<8x128xf32>
    %c0_14 = arith.constant 0 : index
    %c0_15 = arith.constant 0 : index
    %18 = vector.load %arg6[%c0_14, %c0_15] : memref<1x128xf32, #tpu.memory_space<vmem>>, vector<1x128xf32>
    %19 = vector.broadcast %18 : vector<1x128xf32> to vector<8x128xf32>
    %20 = arith.addf %17, %19 : vector<8x128xf32>
    %cst_16 = arith.constant 0.000000e+00 : f32
    %21 = vector.broadcast %cst_16 : f32 to vector<8x128xf32>
    %22 = arith.maximumf %20, %21 : vector<8x128xf32>
    %c0_17 = arith.constant 0 : index
    %c0_18 = arith.constant 0 : index
    %c0_19 = arith.constant 0 : index
    %23 = vector.load %arg7[%c0_17, %c0_18, %c0_19] : memref<1x8x128xi32, #tpu.memory_space<vmem>>, vector<1x8x128xi32>
    %24 = vector.shape_cast %23 : vector<1x8x128xi32> to vector<8x128xi32>
    %c-2147483648_i32_20 = arith.constant -2147483648 : i32
    %25 = vector.broadcast %c-2147483648_i32_20 : i32 to vector<8x128xi32>
    %26 = arith.cmpi uge, %24, %25 : vector<8x128xi32>
    %cst_21 = arith.constant 2.000000e+00 : f32
    %27 = vector.broadcast %cst_21 : f32 to vector<8x128xf32>
    %28 = arith.mulf %22, %27 : vector<8x128xf32>
    %cst_22 = arith.constant 0.000000e+00 : f32
    %29 = vector.broadcast %cst_22 : f32 to vector<8x128xf32>
    %30 = arith.select %26, %28, %29 : vector<8x128xi1>, vector<8x128xf32>
    %c0_23 = arith.constant 0 : index
    %c0_24 = arith.constant 0 : index
    %31 = vector.load %arg8[%c0_23, %c0_24] : memref<128x128xf32, #tpu.memory_space<vmem>>, vector<128x128xf32>
    %cst_25 = arith.constant dense<0.000000e+00> : vector<8x128xf32>
    %32 = tpu.matmul %30, %31, %cst_25 {dimension_numbers = #tpu.dot_dimension_numbers<[1], [0], [0], [1], [0, 0, 1, 1], [], []>} : vector<8x128xf32>, vector<128x128xf32>, vector<8x128xf32> -> vector<8x128xf32>
    %c0_26 = arith.constant 0 : index
    %c0_27 = arith.constant 0 : index
    %33 = vector.load %arg9[%c0_26, %c0_27] : memref<1x128xf32, #tpu.memory_space<vmem>>, vector<1x128xf32>
    %34 = vector.broadcast %33 : vector<1x128xf32> to vector<8x128xf32>
    %35 = arith.addf %32, %34 : vector<8x128xf32>
    %c0_28 = arith.constant 0 : index
    %c0_29 = arith.constant 0 : index
    %c0_30 = arith.constant 0 : index
    %36 = vector.load %arg10[%c0_28, %c0_29, %c0_30] : memref<1x8x128xf32, #tpu.memory_space<vmem>>, vector<1x8x128xf32>
    %37 = vector.shape_cast %36 : vector<1x8x128xf32> to vector<8x128xf32>
    %38 = vector.shape_cast %35 : vector<8x128xf32> to vector<1x8x128xf32>
    tpu.vector_store %arg10[%c0_28, %c0_29, %c0_30], %38 {strides = array<i32>} : memref<1x8x128xf32, #tpu.memory_space<vmem>>, vector<1x8x128xf32>,
    return
  }
  func.func @transform_0(%arg0: i32) -> (i32, i32) {
    %c0_i32 = arith.constant 0 : i32
    %c0_i32_0 = arith.constant 0 : i32
    %c0_i32_1 = arith.constant 0 : i32
    return %c0_i32, %c0_i32_0 : i32, i32
  }
  func.func @transform_1(%arg0: i32) -> (i32, i32) {
    %c0_i32 = arith.constant 0 : i32
    %c0_i32_0 = arith.constant 0 : i32
    %c0_i32_1 = arith.constant 0 : i32
    return %c0_i32, %c0_i32_0 : i32, i32
  }
  func.func @transform_2(%arg0: i32) -> (i32, i32) {
    %c0_i32 = arith.constant 0 : i32
    %c0_i32_0 = arith.constant 0 : i32
    %c0_i32_1 = arith.constant 0 : i32
    return %c0_i32, %c0_i32_0 : i32, i32
  }
  func.func @transform_3(%arg0: i32) -> (i32, i32, i32) {
    %c0_i32 = arith.constant 0 : i32
    %c0_i32_0 = arith.constant 0 : i32
    %c0_i32_1 = arith.constant 0 : i32
    return %arg0, %c0_i32, %c0_i32_0 : i32, i32, i32
  }
  func.func @transform_4(%arg0: i32) -> (i32, i32) {
    %c0_i32 = arith.constant 0 : i32
    %c0_i32_0 = arith.constant 0 : i32
    %c0_i32_1 = arith.constant 0 : i32
    return %c0_i32, %c0_i32_0 : i32, i32
  }
  func.func @transform_5(%arg0: i32) -> (i32, i32) {
    %c0_i32 = arith.constant 0 : i32
    %c0_i32_0 = arith.constant 0 : i32
    %c0_i32_1 = arith.constant 0 : i32
    return %c0_i32, %c0_i32_0 : i32, i32
  }
  func.func @transform_6(%arg0: i32) -> (i32, i32, i32) {
    %c0_i32 = arith.constant 0 : i32
    %c0_i32_0 = arith.constant 0 : i32
    %c0_i32_1 = arith.constant 0 : i32
    return %arg0, %c0_i32, %c0_i32_0 : i32, i32, i32
  }
  func.func @transform_7(%arg0: i32) -> (i32, i32) {
    %c0_i32 = arith.constant 0 : i32
    %c0_i32_0 = arith.constant 0 : i32
    %c0_i32_1 = arith.constant 0 : i32
    return %c0_i32, %c0_i32_0 : i32, i32
  }
  func.func @transform_8(%arg0: i32) -> (i32, i32) {
    %c0_i32 = arith.constant 0 : i32
    %c0_i32_0 = arith.constant 0 : i32
    %c0_i32_1 = arith.constant 0 : i32
    return %c0_i32, %c0_i32_0 : i32, i32
  }
  func.func @transform_9(%arg0: i32) -> (i32, i32, i32) {
    %c0_i32 = arith.constant 0 : i32
    %c0_i32_0 = arith.constant 0 : i32
    %c0_i32_1 = arith.constant 0 : i32
    return %arg0, %c0_i32, %c0_i32_0 : i32, i32, i32
  }
}

</mosaic_0001>

<llo_original>
// kernel: tpu_custom_call.1
$region0: #{tpu_custom_call.1}
  #allocation0 [shape = 'u32[]', space=smem, size = 0x4, offset = 0x4, fixed_abs, tag = 'smem constant byte address 0x4 - core index']
  #allocation1 [shape = 'u32[72,128]{1,0:T(1,128)}', space=vmem, size = 0x9000, scoped, tag = 'internal scratch']
  %s0 = inlined_call_operand.hbm [shape: f32[8,128], index: 0, kind: input, shape index: {}]
  %s1 = inlined_call_operand.hbm [shape: f32[128,128], index: 1, kind: input, shape index: {}]
  %s2 = inlined_call_operand.vmem [shape: f32[1,128], index: 2, kind: input, shape index: {}]
  %s3 = inlined_call_operand.hbm [shape: u32[16,8,128], index: 3, kind: input, shape index: {}]
  %s4 = inlined_call_operand.hbm [shape: f32[128,128], index: 4, kind: input, shape index: {}]
  %s5 = inlined_call_operand.vmem [shape: f32[1,128], index: 5, kind: input, shape index: {}]
  %s6 = inlined_call_operand.hbm [shape: u32[16,8,128], index: 6, kind: input, shape index: {}]
  %s7 = inlined_call_operand.hbm [shape: f32[128,128], index: 7, kind: input, shape index: {}]
  %s8 = inlined_call_operand.vmem [shape: f32[1,128], index: 8, kind: input, shape index: {}]
  %s9 = inlined_call_operand.hbm [shape: f32[16,8,128], index: 9, kind: output, shape index: {}]
  %s10 = sld [smem:[#allocation0]]
  $region93: #{tpu_custom_call.1} parent=0
    _
  %s12 = ssub.s32 1, %s10
  %s13 = scalar_select 0, %s12, %s10
  $region1: #{tpu_custom_call.1} parent=0
    #allocation2 [shape = 'u8[4096]{0}', space=vmem, size = 0x1000, scoped, tag = 'input window, operand 0, single buffered']
    #allocation3 [shape = 's32[2]{0}', space=sflag, size = 0x8, scoped, tag = 'scoped memory for tpu_custom_call.1']
    #allocation4 [shape = 's32[2]{0}', space=sflag, size = 0x8, scoped, tag = 'scoped memory for tpu_custom_call.1']
    #allocation5 [shape = 'u8[65536]{0}', space=vmem, size = 0x10000, scoped, tag = 'input window, operand 1, single buffered']
    #allocation6 [shape = 's32[1]{0}', space=sflag, size = 0x4, scoped, tag = 'scoped memory for tpu_custom_call.1']
    #allocation7 [shape = 'u8[8192]{0}', space=vmem, size = 0x2000, scoped, tag = 'input window, operand 3']
    #allocation8 [shape = 'u8[65536]{0}', space=vmem, size = 0x10000, scoped, tag = 'input window, operand 4, single buffered']
    #allocation9 [shape = 'u8[8192]{0}', space=vmem, size = 0x2000, scoped, tag = 'input window, operand 6']
    #allocation10 [shape = 's32[2]{0}', space=sflag, size = 0x8, scoped, tag = 'scoped memory for tpu_custom_call.1']
    #allocation11 [shape = 'u8[65536]{0}', space=vmem, size = 0x10000, scoped, tag = 'input window, operand 7, single buffered']
    #allocation12 [shape = 'u8[8192]{0}', space=vmem, size = 0x2000, scoped, tag = 'output window, operand 0']
    %14 = vsyncpa [#allocation3], 0
    %15 = vsyncpa [#allocation6], 0
    %16 = vsyncpa [#allocation10], 0
    %s17 = scalar_lea.sflag [#allocation10], 1
    %18 = vsyncpa %s17, 0
    %19 = vsyncpa [#allocation4], 0
    %s20 = scalar_lea.sflag [#allocation4], 1
    %21 = vsyncpa %s20, 0
    loop: start=0, step=1, limit=18
    $region2: #{tpu_custom_call.1} parent=1 // loop_pre_header
      _
    $region3: #{tpu_custom_call.1} parent=1 // loop_header
      %s23 = sphi 0, %s27
      %p24 = scmp.ge.s32.totalorder %s23, 18
      %s31 = sphi 0, %s31
      %s33 = sphi 0, %s31
      %s34 = sphi 0, %s33
      %s48 = sphi 0, %s34
      %s52 = sphi 0, %s52
      %s54 = sphi 0, %s52
      %s55 = sphi 0, %s54
      %s69 = sphi 0, %s55
      %s73 = sphi 0, %s73
      %s75 = sphi 0, %s73
      %s76 = sphi 0, %s75
      %s90 = sphi 0, %s76
      %s96 = sphi 0, %s98
      %s99 = sphi 0, %s96
      %s100 = sphi 0, %s99
      %s116 = sphi 0, %s100
      %s120 = sphi 0, %s120
      %s122 = sphi 0, %s120
      %s123 = sphi 0, %s122
      %s137 = sphi 0, %s123
      %s141 = sphi 0, %s141
      %s143 = sphi 0, %s141
      %s144 = sphi 0, %s143
      %s158 = sphi 0, %s144
      %s164 = sphi 0, %s166
      %s167 = sphi 0, %s164
      %s168 = sphi 0, %s167
      %s184 = sphi 0, %s168
      %s188 = sphi 0, %s188
      %s190 = sphi 0, %s188
      %s191 = sphi 0, %s190
      %s205 = sphi 0, %s191
      %s209 = sphi 0, %s209
      %s211 = sphi 0, %s209
      %s212 = sphi 0, %s211
      %s226 = sphi 0, %s212
      %s232 = sphi 0, %s234
      %s235 = sphi 0, %s232
      %s236 = sphi 0, %s235
      %s252 = sphi 0, %s236
    $region4: #{tpu_custom_call.1} parent=1 // loop_header_branch
      %26 = sbr.rel (%p24) target = $region8
    $region5: #{tpu_custom_call.1} parent=1 // loop_body
      %s28 = ssub.s32 %s23, 1
      %s29 = ssub.s32 %s23, 2
      %s30 = sadd.s32 %s23, 1
      %s32 = sadd.s32 %s31, 1
      %p35 = scmp.eq.s32.totalorder %s23, 15
      %p36 = scmp.ne.s32.totalorder %s31, %s33
      %p37 = scmp.eq.s32.totalorder %s23, 0
      %p38 = por %p36, %p37
      %p39 = scmp.ne.s32.totalorder %s31, %s33
      %p40 = scmp.eq.s32.totalorder %s28, 15
      %p41 = por %p39, %p40
      %p42 = scmp.ne.s32.totalorder %s33, %s34
      %p43 = scmp.eq.s32.totalorder %s28, 0
      %p44 = por %p42, %p43
      %p45 = scmp.ne.s32.totalorder %s33, %s34
      %p46 = scmp.eq.s32.totalorder %s29, 15
      %p47 = por %p45, %p46
      %p49 = scmp.ne.s32.totalorder %s34, %s48
      %p50 = scmp.eq.s32.totalorder %s29, 0
      %p51 = por %p49, %p50
      %s53 = sadd.s32 %s52, 1
      %p56 = scmp.eq.s32.totalorder %s23, 15
      %p57 = scmp.ne.s32.totalorder %s52, %s54
      %p58 = scmp.eq.s32.totalorder %s23, 0
      %p59 = por %p57, %p58
      %p60 = scmp.ne.s32.totalorder %s52, %s54
      %p61 = scmp.eq.s32.totalorder %s28, 15
      %p62 = por %p60, %p61
      %p63 = scmp.ne.s32.totalorder %s54, %s55
      %p64 = scmp.eq.s32.totalorder %s28, 0
      %p65 = por %p63, %p64
      %p66 = scmp.ne.s32.totalorder %s54, %s55
      %p67 = scmp.eq.s32.totalorder %s29, 15
      %p68 = por %p66, %p67
      %p70 = scmp.ne.s32.totalorder %s55, %s69
      %p71 = scmp.eq.s32.totalorder %s29, 0
      %p72 = por %p70, %p71
      %s74 = sadd.s32 %s73, 1
      %p77 = scmp.eq.s32.totalorder %s23, 15
      %p78 = scmp.ne.s32.totalorder %s73, %s75
      %p79 = scmp.eq.s32.totalorder %s23, 0
      %p80 = por %p78, %p79
      %p81 = scmp.ne.s32.totalorder %s73, %s75
      %p82 = scmp.eq.s32.totalorder %s28, 15
      %p83 = por %p81, %p82
      %p84 = scmp.ne.s32.totalorder %s75, %s76
      %p85 = scmp.eq.s32.totalorder %s28, 0
      %p86 = por %p84, %p85
      %p87 = scmp.ne.s32.totalorder %s75, %s76
      %p88 = scmp.eq.s32.totalorder %s29, 15
      %p89 = por %p87, %p88
      %p91 = scmp.ne.s32.totalorder %s76, %s90
      %p92 = scmp.eq.s32.totalorder %s29, 0
      %p93 = por %p91, %p92
      %s94 = ssub.s32 %s23, %s30
      %p95 = scmp.eq.s32.totalorder %s94, 0
      %s97 = sadd.s32 %s96, 1
      %s98 = scalar_select %p95, %s96, %s97
      %p101 = pneg %p95
      %p102 = scmp.eq.s32.totalorder %s23, 15
      %p103 = por %p101, %p102
      %p104 = scmp.ne.s32.totalorder %s96, %s99
      %p105 = scmp.eq.s32.totalorder %s23, 0
      %p106 = por %p104, %p105
      %p107 = scmp.ne.s32.totalorder %s96, %s99
      %p108 = scmp.eq.s32.totalorder %s28, 15
      %p109 = por %p107, %p108
      %p110 = scmp.ne.s32.totalorder %s99, %s100
      %p111 = scmp.eq.s32.totalorder %s28, 0
      %p112 = por %p110, %p111
      %p113 = scmp.ne.s32.totalorder %s99, %s100
      %p114 = scmp.eq.s32.totalorder %s29, 15
      %p115 = por %p113, %p114
      %p117 = scmp.ne.s32.totalorder %s100, %s116
      %p118 = scmp.eq.s32.totalorder %s29, 0
      %p119 = por %p117, %p118
      %s121 = sadd.s32 %s120, 1
      %p124 = scmp.eq.s32.totalorder %s23, 15
      %p125 = scmp.ne.s32.totalorder %s120, %s122
      %p126 = scmp.eq.s32.totalorder %s23, 0
      %p127 = por %p125, %p126
      %p128 = scmp.ne.s32.totalorder %s120, %s122
      %p129 = scmp.eq.s32.totalorder %s28, 15
      %p130 = por %p128, %p129
      %p131 = scmp.ne.s32.totalorder %s122, %s123
      %p132 = scmp.eq.s32.totalorder %s28, 0
      %p133 = por %p131, %p132
      %p134 = scmp.ne.s32.totalorder %s122, %s123
      %p135 = scmp.eq.s32.totalorder %s29, 15
      %p136 = por %p134, %p135
      %p138 = scmp.ne.s32.totalorder %s123, %s137
      %p139 = scmp.eq.s32.totalorder %s29, 0
      %p140 = por %p138, %p139
      %s142 = sadd.s32 %s141, 1
      %p145 = scmp.eq.s32.totalorder %s23, 15
      %p146 = scmp.ne.s32.totalorder %s141, %s143
      %p147 = scmp.eq.s32.totalorder %s23, 0
      %p148 = por %p146, %p147
      %p149 = scmp.ne.s32.totalorder %s141, %s143
      %p150 = scmp.eq.s32.totalorder %s28, 15
      %p151 = por %p149, %p150
      %p152 = scmp.ne.s32.totalorder %s143, %s144
      %p153 = scmp.eq.s32.totalorder %s28, 0
      %p154 = por %p152, %p153
      %p155 = scmp.ne.s32.totalorder %s143, %s144
      %p156 = scmp.eq.s32.totalorder %s29, 15
      %p157 = por %p155, %p156
      %p159 = scmp.ne.s32.totalorder %s144, %s158
      %p160 = scmp.eq.s32.totalorder %s29, 0
      %p161 = por %p159, %p160
      %s162 = ssub.s32 %s23, %s30
      %p163 = scmp.eq.s32.totalorder %s162, 0
      %s165 = sadd.s32 %s164, 1
      %s166 = scalar_select %p163, %s164, %s165
      %p169 = pneg %p163
      %p170 = scmp.eq.s32.totalorder %s23, 15
      %p171 = por %p169, %p170
      %p172 = scmp.ne.s32.totalorder %s164, %s167
      %p173 = scmp.eq.s32.totalorder %s23, 0
      %p174 = por %p172, %p173
      %p175 = scmp.ne.s32.totalorder %s164, %s167
      %p176 = scmp.eq.s32.totalorder %s28, 15
      %p177 = por %p175, %p176
      %p178 = scmp.ne.s32.totalorder %s167, %s168
      %p179 = scmp.eq.s32.totalorder %s28, 0
      %p180 = por %p178, %p179
      %p181 = scmp.ne.s32.totalorder %s167, %s168
      %p182 = scmp.eq.s32.totalorder %s29, 15
      %p183 = por %p181, %p182
      %p185 = scmp.ne.s32.totalorder %s168, %s184
      %p186 = scmp.eq.s32.totalorder %s29, 0
      %p187 = por %p185, %p186
      %s189 = sadd.s32 %s188, 1
      %p192 = scmp.eq.s32.totalorder %s23, 15
      %p193 = scmp.ne.s32.totalorder %s188, %s190
      %p194 = scmp.eq.s32.totalorder %s23, 0
      %p195 = por %p193, %p194
      %p196 = scmp.ne.s32.totalorder %s188, %s190
      %p197 = scmp.eq.s32.totalorder %s28, 15
      %p198 = por %p196, %p197
      %p199 = scmp.ne.s32.totalorder %s190, %s191
      %p200 = scmp.eq.s32.totalorder %s28, 0
      %p201 = por %p199, %p200
      %p202 = scmp.ne.s32.totalorder %s190, %s191
      %p203 = scmp.eq.s32.totalorder %s29, 15
      %p204 = por %p202, %p203
      %p206 = scmp.ne.s32.totalorder %s191, %s205
      %p207 = scmp.eq.s32.totalorder %s29, 0
      %p208 = por %p206, %p207
      %s210 = sadd.s32 %s209, 1
      %p213 = scmp.eq.s32.totalorder %s23, 15
      %p214 = scmp.ne.s32.totalorder %s209, %s211
      %p215 = scmp.eq.s32.totalorder %s23, 0
      %p216 = por %p214, %p215
      %p217 = scmp.ne.s32.totalorder %s209, %s211
      %p218 = scmp.eq.s32.totalorder %s28, 15
      %p219 = por %p217, %p218
      %p220 = scmp.ne.s32.totalorder %s211, %s212
      %p221 = scmp.eq.s32.totalorder %s28, 0
      %p222 = por %p220, %p221
      %p223 = scmp.ne.s32.totalorder %s211, %s212
      %p224 = scmp.eq.s32.totalorder %s29, 15
      %p225 = por %p223, %p224
      %p227 = scmp.ne.s32.totalorder %s212, %s226
      %p228 = scmp.eq.s32.totalorder %s29, 0
      %p229 = por %p227, %p228
      %s230 = ssub.s32 %s23, %s30
      %p231 = scmp.eq.s32.totalorder %s230, 0
      %s233 = sadd.s32 %s232, 1
      %s234 = scalar_select %p231, %s232, %s233
      %p237 = pneg %p231
      %p238 = scmp.eq.s32.totalorder %s23, 15
      %p239 = por %p237, %p238
      %p240 = scmp.ne.s32.totalorder %s232, %s235
      %p241 = scmp.eq.s32.totalorder %s23, 0
      %p242 = por %p240, %p241
      %p243 = scmp.ne.s32.totalorder %s232, %s235
      %p244 = scmp.eq.s32.totalorder %s28, 15
      %p245 = por %p243, %p244
      %p246 = scmp.ne.s32.totalorder %s235, %s236
      %p247 = scmp.eq.s32.totalorder %s28, 0
      %p248 = por %p246, %p247
      %p249 = scmp.ne.s32.totalorder %s235, %s236
      %p250 = scmp.eq.s32.totalorder %s29, 15
      %p251 = por %p249, %p250
      %p253 = scmp.ne.s32.totalorder %s236, %s252
      %p254 = scmp.eq.s32.totalorder %s29, 0
      %p255 = por %p253, %p254
      %p256 = scmp.le.s32.totalorder 1, %s23
      %p257 = scmp.lt.s32.totalorder %s23, 17
      %p258 = pnand %p256, %p257
      %p259 = pneg %p258
      // Predicated region
      $region9: #{tpu_custom_call.1} parent=5 // pred_check
        _
      $region10: #{tpu_custom_call.1} parent=5 // pred_check_branch
        %261 = sbr.rel (%p258) target = $region12
      $region11: #{tpu_custom_call.1} parent=5 // pred_region
        %s262 = ssub.s32 %s23, 1
        // Predicated region
        $region13: #{tpu_custom_call.1} parent=11 // pred_check
          %p263 = pneg %p44
        $region14: #{tpu_custom_call.1} parent=11 // pred_check_branch
          %265 = sbr.rel (%p263) target = $region16
        $region15: #{tpu_custom_call.1} parent=11 // pred_region
          %267 = vsyncadd [#allocation3], 0
          %s269 = sshll.u32 %s0, 4
          %s270 = int_to_ptr.hbm [resolvable:$true] %s269
          %s271 = sshll.u32 [#allocation2], 4
          %s272 = int_to_ptr.vmem [resolvable:$true] %s271
          %274 = dma.hbm_to_vmem [thread:$0]  %s270, 128, %s272, [#allocation3]
        $region16: #{tpu_custom_call.1} parent=11 // pred_fallthru
          _
        // Predicated region
        $region17: #{tpu_custom_call.1} parent=11 // pred_check
          %p275 = pneg %p65
        $region18: #{tpu_custom_call.1} parent=11 // pred_check_branch
          %277 = sbr.rel (%p275) target = $region20
        $region19: #{tpu_custom_call.1} parent=11 // pred_region
          %279 = vsyncadd [#allocation6], 0
          %s280 = sshll.u32 %s1, 4
          %s281 = int_to_ptr.hbm [resolvable:$true] %s280
          %s282 = sshll.u32 [#allocation5], 4
          %s283 = int_to_ptr.vmem [resolvable:$true] %s282
          %288 = dma.hbm_to_vmem [thread:$0]  %s281, 2048, %s283, [#allocation6], 128, 128, 8
        $region20: #{tpu_custom_call.1} parent=11 // pred_fallthru
          _
        // Predicated region
        $region21: #{tpu_custom_call.1} parent=11 // pred_check
          %p289 = pneg %p86
        $region22: #{tpu_custom_call.1} parent=11 // pred_check_branch
          %291 = sbr.rel (%p289) target = $region24
        $region23: #{tpu_custom_call.1} parent=11 // pred_region
          _
        $region24: #{tpu_custom_call.1} parent=11 // pred_fallthru
          _
        // Predicated region
        $region25: #{tpu_custom_call.1} parent=11 // pred_check
          %p292 = pneg %p133
        $region26: #{tpu_custom_call.1} parent=11 // pred_check_branch
          %294 = sbr.rel (%p292) target = $region28
        $region27: #{tpu_custom_call.1} parent=11 // pred_region
          %296 = vsyncadd [#allocation6], 0
          %s297 = sshll.u32 %s4, 4
          %s298 = int_to_ptr.hbm [resolvable:$true] %s297
          %s299 = sshll.u32 [#allocation8], 4
          %s300 = int_to_ptr.vmem [resolvable:$true] %s299
          %305 = dma.hbm_to_vmem [thread:$0]  %s298, 2048, %s300, [#allocation6], 128, 128, 8
        $region28: #{tpu_custom_call.1} parent=11 // pred_fallthru
          _
        // Predicated region
        $region29: #{tpu_custom_call.1} parent=11 // pred_check
          %p306 = pneg %p154
        $region30: #{tpu_custom_call.1} parent=11 // pred_check_branch
          %308 = sbr.rel (%p306) target = $region32
        $region31: #{tpu_custom_call.1} parent=11 // pred_region
          _
        $region32: #{tpu_custom_call.1} parent=11 // pred_fallthru
          _
        // Predicated region
        $region33: #{tpu_custom_call.1} parent=11 // pred_check
          %p309 = pneg %p201
        $region34: #{tpu_custom_call.1} parent=11 // pred_check_branch
          %311 = sbr.rel (%p309) target = $region36
        $region35: #{tpu_custom_call.1} parent=11 // pred_region
          %313 = vsyncadd [#allocation10], 0
          %s314 = sshll.u32 %s7, 4
          %s315 = int_to_ptr.hbm [resolvable:$true] %s314
          %s316 = sshll.u32 [#allocation11], 4
          %s317 = int_to_ptr.vmem [resolvable:$true] %s316
          %322 = dma.hbm_to_vmem [thread:$0]  %s315, 2048, %s317, [#allocation10], 128, 128, 8
        $region36: #{tpu_custom_call.1} parent=11 // pred_fallthru
          _
        // Predicated region
        $region37: #{tpu_custom_call.1} parent=11 // pred_check
          %p323 = pneg %p222
        $region38: #{tpu_custom_call.1} parent=11 // pred_check_branch
          %325 = sbr.rel (%p323) target = $region40
        $region39: #{tpu_custom_call.1} parent=11 // pred_region
          _
        $region40: #{tpu_custom_call.1} parent=11 // pred_fallthru
          _
      $region12: #{tpu_custom_call.1} parent=5 // pred_fallthru
        _
      %p326 = scmp.lt.s32.totalorder %s23, 16
      // Predicated region
      $region41: #{tpu_custom_call.1} parent=5 // pred_check
        %p327 = pneg %p326
      $region42: #{tpu_custom_call.1} parent=5 // pred_check_branch
        %329 = sbr.rel (%p327) target = $region44
      $region43: #{tpu_custom_call.1} parent=5 // pred_region
        // Predicated region
        $region45: #{tpu_custom_call.1} parent=43 // pred_check
          %p330 = pneg %p106
        $region46: #{tpu_custom_call.1} parent=43 // pred_check_branch
          %332 = sbr.rel (%p330) target = $region48
        $region47: #{tpu_custom_call.1} parent=43 // pred_region
          %s333 = sand.u32 %s23, 1
          %s334 = scalar_lea.sflag [#allocation3], %s333
          %s335 = sand.u32 %s96, 1
          %s336 = smul.addr %s335, 8
          %s337 = scalar_lea.vmem [#allocation7], %s336
          %339 = vsyncadd %s334, 0
          %s340 = smul.addr %s23, 8
          %s341 = scalar_lea.hbm %s3, %s340
          %s343 = sshll.u32 %s341, 4
          %s344 = int_to_ptr.hbm [resolvable:$true] %s343
          %s345 = sshll.u32 %s337, 4
          %s346 = int_to_ptr.vmem [resolvable:$true] %s345
          %348 = dma.hbm_to_vmem [thread:$0]  %s344, 128, %s346, %s334
        $region48: #{tpu_custom_call.1} parent=43 // pred_fallthru
          _
        // Predicated region
        $region49: #{tpu_custom_call.1} parent=43 // pred_check
          %p349 = pneg %p174
        $region50: #{tpu_custom_call.1} parent=43 // pred_check_branch
          %351 = sbr.rel (%p349) target = $region52
        $region51: #{tpu_custom_call.1} parent=43 // pred_region
          %s352 = sand.u32 %s23, 1
          %s353 = scalar_lea.sflag [#allocation10], %s352
          %s354 = sand.u32 %s164, 1
          %s355 = smul.addr %s354, 8
          %s356 = scalar_lea.vmem [#allocation9], %s355
          %358 = vsyncadd %s353, 0
          %s359 = smul.addr %s23, 8
          %s360 = scalar_lea.hbm %s6, %s359
          %s362 = sshll.u32 %s360, 4
          %s363 = int_to_ptr.hbm [resolvable:$true] %s362
          %s364 = sshll.u32 %s356, 4
          %s365 = int_to_ptr.vmem [resolvable:$true] %s364
          %367 = dma.hbm_to_vmem [thread:$0]  %s363, 128, %s365, %s353
        $region52: #{tpu_custom_call.1} parent=43 // pred_fallthru
          _
      $region44: #{tpu_custom_call.1} parent=5 // pred_fallthru
        _
      %p368 = scmp.le.s32.totalorder 1, %s23
      %p369 = scmp.lt.s32.totalorder %s23, 17
      %p370 = pnand %p368, %p369
      %p371 = pneg %p370
      // Predicated region
      $region53: #{tpu_custom_call.1} parent=5 // pred_check
        _
      $region54: #{tpu_custom_call.1} parent=5 // pred_check_branch
        %373 = sbr.rel (%p370) target = $region56
      $region55: #{tpu_custom_call.1} parent=5 // pred_region
        %s374 = ssub.s32 %s23, 1
        // Predicated region
        $region57: #{tpu_custom_call.1} parent=55 // pred_check
          %p375 = pneg %p44
        $region58: #{tpu_custom_call.1} parent=55 // pred_check_branch
          %377 = sbr.rel (%p375) target = $region60
        $region59: #{tpu_custom_call.1} parent=55 // pred_region
          %379 = dma.done [#allocation3], 128
        $region60: #{tpu_custom_call.1} parent=55 // pred_fallthru
          _
        // Predicated region
        $region61: #{tpu_custom_call.1} parent=55 // pred_check
          %p380 = pneg %p65
        $region62: #{tpu_custom_call.1} parent=55 // pred_check_branch
          %382 = sbr.rel (%p380) target = $region64
        $region63: #{tpu_custom_call.1} parent=55 // pred_region
          %384 = dma.done [#allocation6], 2048
        $region64: #{tpu_custom_call.1} parent=55 // pred_fallthru
          _
        %s385 = sand.u32 %s28, 1
        %s386 = scalar_lea.sflag [#allocation3], %s385
        %s387 = sand.u32 %s99, 1
        %s388 = smul.addr %s387, 8
        %s389 = scalar_lea.vmem [#allocation7], %s388
        // Predicated region
        $region65: #{tpu_custom_call.1} parent=55 // pred_check
          %p390 = pneg %p112
        $region66: #{tpu_custom_call.1} parent=55 // pred_check_branch
          %392 = sbr.rel (%p390) target = $region68
        $region67: #{tpu_custom_call.1} parent=55 // pred_region
          %394 = dma.done %s386, 128
        $region68: #{tpu_custom_call.1} parent=55 // pred_fallthru
          _
        // Predicated region
        $region69: #{tpu_custom_call.1} parent=55 // pred_check
          %p395 = pneg %p133
        $region70: #{tpu_custom_call.1} parent=55 // pred_check_branch
          %397 = sbr.rel (%p395) target = $region72
        $region71: #{tpu_custom_call.1} parent=55 // pred_region
          %399 = dma.done [#allocation6], 2048
        $region72: #{tpu_custom_call.1} parent=55 // pred_fallthru
          _
        %s400 = sand.u32 %s28, 1
        %s401 = scalar_lea.sflag [#allocation10], %s400
        %s402 = sand.u32 %s167, 1
        %s403 = smul.addr %s402, 8
        %s404 = scalar_lea.vmem [#allocation9], %s403
        // Predicated region
        $region73: #{tpu_custom_call.1} parent=55 // pred_check
          %p405 = pneg %p180
        $region74: #{tpu_custom_call.1} parent=55 // pred_check_branch
          %407 = sbr.rel (%p405) target = $region76
        $region75: #{tpu_custom_call.1} parent=55 // pred_region
          %409 = dma.done %s401, 128
        $region76: #{tpu_custom_call.1} parent=55 // pred_fallthru
          _
        // Predicated region
        $region77: #{tpu_custom_call.1} parent=55 // pred_check
          %p410 = pneg %p201
        $region78: #{tpu_custom_call.1} parent=55 // pred_check_branch
          %412 = sbr.rel (%p410) target = $region80
        $region79: #{tpu_custom_call.1} parent=55 // pred_region
          %414 = dma.done [#allocation10], 2048
        $region80: #{tpu_custom_call.1} parent=55 // pred_fallthru
          _
        %p415 = pneg %p44
        %p416 = pneg %p41
        %p417 = pneg %p65
        %p418 = pneg %p62
        %p419 = pneg %p86
        %p420 = pneg %p83
        %s421 = sand.u32 %s28, 1
        %s422 = scalar_lea.sflag [#allocation3], %s421
        %s423 = sand.u32 %s99, 1
        %s424 = smul.addr %s423, 8
        %s425 = scalar_lea.vmem [#allocation7], %s424
        %p426 = pneg %p112
        %p427 = pneg %p109
        %p428 = pneg %p133
        %p429 = pneg %p130
        %p430 = pneg %p154
        %p431 = pneg %p151
        %s432 = sand.u32 %s28, 1
        %s433 = scalar_lea.sflag [#allocation10], %s432
        %s434 = sand.u32 %s167, 1
        %s435 = smul.addr %s434, 8
        %s436 = scalar_lea.vmem [#allocation9], %s435
        %p437 = pneg %p180
        %p438 = pneg %p177
        %p439 = pneg %p201
        %p440 = pneg %p198
        %p441 = pneg %p222
        %p442 = pneg %p219
        %p443 = pneg %p248
        %p444 = pneg %p245
        %s445 = sand.u32 %s235, 1
        %s446 = scalar_lea.sflag [#allocation4], %s445
        %s447 = sand.u32 %s235, 1
        %s448 = smul.addr %s447, 8
        %s449 = scalar_lea.vmem [#allocation12], %s448
        %v450 = vld [vmem:[#allocation2] sm:$0xff]
        %v451 = vld [vmem:[#allocation5] sm:$0xff]
        %v452 = vld [vmem:[#allocation5 + $0x8] sm:$0xff]
        %v453 = vld [vmem:[#allocation5 + $0x10] sm:$0xff]
        %v454 = vld [vmem:[#allocation5 + $0x18] sm:$0xff]
        %v455 = vld [vmem:[#allocation5 + $0x20] sm:$0xff]
        %v456 = vld [vmem:[#allocation5 + $0x28] sm:$0xff]
        %v457 = vld [vmem:[#allocation5 + $0x30] sm:$0xff]
        %v458 = vld [vmem:[#allocation5 + $0x38] sm:$0xff]
        %v459 = vld [vmem:[#allocation5 + $0x40] sm:$0xff]
        %v460 = vld [vmem:[#allocation5 + $0x48] sm:$0xff]
        %v461 = vld [vmem:[#allocation5 + $0x50] sm:$0xff]
        %v462 = vld [vmem:[#allocation5 + $0x58] sm:$0xff]
        %v463 = vld [vmem:[#allocation5 + $0x60] sm:$0xff]
        %v464 = vld [vmem:[#allocation5 + $0x68] sm:$0xff]
        %v465 = vld [vmem:[#allocation5 + $0x70] sm:$0xff]
        %v466 = vld [vmem:[#allocation5 + $0x78] sm:$0xff]
        %v467 = vld [vmem:[%s2] sm:$0x1]
        %v469 = vperm.slane %v467, 0
        %471 = vmatpush.msra.mxu0 %v466
        %472 = vmatpush.msra.mxu0 %v465
        %473 = vmatpush.msra.mxu0 %v464
        %474 = vmatpush.msra.mxu0 %v463
        %475 = vmatpush.msra.mxu0 %v462
        %476 = vmatpush.msra.mxu0 %v461
        %477 = vmatpush.msra.mxu0 %v460
        %478 = vmatpush.msra.mxu0 %v459
        %479 = vmatpush.msra.mxu0 %v458
        %480 = vmatpush.msra.mxu0 %v457
        %481 = vmatpush.msra.mxu0 %v456
        %482 = vmatpush.msra.mxu0 %v455
        %483 = vmatpush.msra.mxu0 %v454
        %484 = vmatpush.msra.mxu0 %v453
        %485 = vmatpush.msra.mxu0 %v452
        %486 = vmatpush.msra.mxu0 %v451
        %487 = vmatmul.f32.gmra.mxu0 %v450
        %v488 = vpop.f32.mrf.mxu0
        %v489 = vadd.f32 %v469, %v488
        %490 = vdwg.mxu0
        %v491 = vmax.f32 %v489, 0.0
        %v492 = vld [vmem:[%s389] sm:$0xff]
        %v493 = vadd.s32 %v492, 2147483648
        %vm495 = vcmp.ge.s32.totalorder %v493, 0
        %v496 = vmul.f32 %v491, 2.0
        %v497 = vsel %vm495, %v496, 0.0
        %v498 = vld [vmem:[#allocation8] sm:$0xff]
        %v499 = vld [vmem:[#allocation8 + $0x8] sm:$0xff]
        %v500 = vld [vmem:[#allocation8 + $0x10] sm:$0xff]
        %v501 = vld [vmem:[#allocation8 + $0x18] sm:$0xff]
        %v502 = vld [vmem:[#allocation8 + $0x20] sm:$0xff]
        %v503 = vld [vmem:[#allocation8 + $0x28] sm:$0xff]
        %v504 = vld [vmem:[#allocation8 + $0x30] sm:$0xff]
        %v505 = vld [vmem:[#allocation8 + $0x38] sm:$0xff]
        %v506 = vld [vmem:[#allocation8 + $0x40] sm:$0xff]
        %v507 = vld [vmem:[#allocation8 + $0x48] sm:$0xff]
        %v508 = vld [vmem:[#allocation8 + $0x50] sm:$0xff]
        %v509 = vld [vmem:[#allocation8 + $0x58] sm:$0xff]
        %v510 = vld [vmem:[#allocation8 + $0x60] sm:$0xff]
        %v511 = vld [vmem:[#allocation8 + $0x68] sm:$0xff]
        %v512 = vld [vmem:[#allocation8 + $0x70] sm:$0xff]
        %v513 = vld [vmem:[#allocation8 + $0x78] sm:$0xff]
        %v514 = vld [vmem:[%s5] sm:$0x1]
        %v516 = vperm.slane %v514, 0
        %518 = vmatpush.msra.mxu0 %v513
        %519 = vmatpush.msra.mxu0 %v512
        %520 = vmatpush.msra.mxu0 %v511
        %521 = vmatpush.msra.mxu0 %v510
        %522 = vmatpush.msra.mxu0 %v509
        %523 = vmatpush.msra.mxu0 %v508
        %524 = vmatpush.msra.mxu0 %v507
        %525 = vmatpush.msra.mxu0 %v506
        %526 = vmatpush.msra.mxu0 %v505
        %527 = vmatpush.msra.mxu0 %v504
        %528 = vmatpush.msra.mxu0 %v503
        %529 = vmatpush.msra.mxu0 %v502
        %530 = vmatpush.msra.mxu0 %v501
        %531 = vmatpush.msra.mxu0 %v500
        %532 = vmatpush.msra.mxu0 %v499
        %533 = vmatpush.msra.mxu0 %v498
        %534 = vmatmul.f32.gmra.mxu0 %v497
        %v535 = vpop.f32.mrf.mxu0
        %v536 = vadd.f32 %v516, %v535
        %537 = vdwg.mxu0
        %v538 = vmax.f32 %v536, 0.0
        %v539 = vld [vmem:[%s404] sm:$0xff]
        %v540 = vadd.s32 %v539, 2147483648
        %vm542 = vcmp.ge.s32.totalorder %v540, 0
        %v543 = vmul.f32 %v538, 2.0
        %v544 = vsel %vm542, %v543, 0.0
        %v545 = vld [vmem:[#allocation11] sm:$0xff]
        %v546 = vld [vmem:[#allocation11 + $0x8] sm:$0xff]
        %v547 = vld [vmem:[#allocation11 + $0x10] sm:$0xff]
        %v548 = vld [vmem:[#allocation11 + $0x18] sm:$0xff]
        %v549 = vld [vmem:[#allocation11 + $0x20] sm:$0xff]
        %v550 = vld [vmem:[#allocation11 + $0x28] sm:$0xff]
        %v551 = vld [vmem:[#allocation11 + $0x30] sm:$0xff]
        %v552 = vld [vmem:[#allocation11 + $0x38] sm:$0xff]
        %v553 = vld [vmem:[#allocation11 + $0x40] sm:$0xff]
        %v554 = vld [vmem:[#allocation11 + $0x48] sm:$0xff]
        %v555 = vld [vmem:[#allocation11 + $0x50] sm:$0xff]
        %v556 = vld [vmem:[#allocation11 + $0x58] sm:$0xff]
        %v557 = vld [vmem:[#allocation11 + $0x60] sm:$0xff]
        %v558 = vld [vmem:[#allocation11 + $0x68] sm:$0xff]
        %v559 = vld [vmem:[#allocation11 + $0x70] sm:$0xff]
        %v560 = vld [vmem:[#allocation11 + $0x78] sm:$0xff]
        %v561 = vld [vmem:[%s8] sm:$0x1]
        %v563 = vperm.slane %v561, 0
        %565 = vmatpush.msra.mxu0 %v560
        %566 = vmatpush.msra.mxu0 %v559
        %567 = vmatpush.msra.mxu0 %v558
        %568 = vmatpush.msra.mxu0 %v557
        %569 = vmatpush.msra.mxu0 %v556
        %570 = vmatpush.msra.mxu0 %v555
        %571 = vmatpush.msra.mxu0 %v554
        %572 = vmatpush.msra.mxu0 %v553
        %573 = vmatpush.msra.mxu0 %v552
        %574 = vmatpush.msra.mxu0 %v551
        %575 = vmatpush.msra.mxu0 %v550
        %576 = vmatpush.msra.mxu0 %v549
        %577 = vmatpush.msra.mxu0 %v548
        %578 = vmatpush.msra.mxu0 %v547
        %579 = vmatpush.msra.mxu0 %v546
        %580 = vmatpush.msra.mxu0 %v545
        %581 = vmatmul.f32.gmra.mxu0 %v544
        %v582 = vpop.f32.mrf.mxu0
        %v583 = vadd.f32 %v563, %v582
        %584 = vdwg.mxu0
        %585 = vst [vmem:[%s449] sm:$0xff] %v583
        %s586 = sand.u32 %s235, 1
        %s587 = scalar_lea.sflag [#allocation4], %s586
        %s588 = sand.u32 %s235, 1
        %s589 = smul.addr %s588, 8
        %s590 = scalar_lea.vmem [#allocation12], %s589
        // Predicated region
        $region81: #{tpu_custom_call.1} parent=55 // pred_check
          %p591 = pneg %p245
        $region82: #{tpu_custom_call.1} parent=55 // pred_check_branch
          %593 = sbr.rel (%p591) target = $region84
        $region83: #{tpu_custom_call.1} parent=55 // pred_region
          %595 = vsyncadd %s587, 0
          %s596 = smul.addr %s28, 8
          %s597 = scalar_lea.hbm %s9, %s596
          %s599 = sshll.u32 %s590, 4
          %s600 = int_to_ptr.vmem [resolvable:$true] %s599
          %s601 = sshll.u32 %s597, 4
          %s602 = int_to_ptr.hbm [resolvable:$true] %s601
          %604 = dma.vmem_to_hbm [thread:$0]  %s600, 128, %s602, %s587
        $region84: #{tpu_custom_call.1} parent=55 // pred_fallthru
          _
      $region56: #{tpu_custom_call.1} parent=5 // pred_fallthru
        _
      %p605 = scmp.le.s32.totalorder 2, %s23
      // Predicated region
      $region85: #{tpu_custom_call.1} parent=5 // pred_check
        %p606 = pneg %p605
      $region86: #{tpu_custom_call.1} parent=5 // pred_check_branch
        %608 = sbr.rel (%p606) target = $region88
      $region87: #{tpu_custom_call.1} parent=5 // pred_region
        %s609 = ssub.s32 %s23, 2
        // Predicated region
        $region89: #{tpu_custom_call.1} parent=87 // pred_check
          %p610 = pneg %p251
        $region90: #{tpu_custom_call.1} parent=87 // pred_check_branch
          %612 = sbr.rel (%p610) target = $region92
        $region91: #{tpu_custom_call.1} parent=87 // pred_region
          %s613 = sand.u32 %s236, 1
          %s614 = scalar_lea.sflag [#allocation4], %s613
          %s615 = sand.u32 %s236, 1
          %s616 = smul.addr %s615, 8
          %s617 = scalar_lea.vmem [#allocation12], %s616
          %619 = dma.done %s614, 128
        $region92: #{tpu_custom_call.1} parent=87 // pred_fallthru
          _
      $region88: #{tpu_custom_call.1} parent=5 // pred_fallthru
        _
    $region6: #{tpu_custom_call.1} parent=1 // loop_footer
      %s27 = sadd.s32 1, %s23
    $region7: #{tpu_custom_call.1} parent=1 // loop_footer_branch
      %22 = sbr.rel target = $region3
    $region8: #{tpu_custom_call.1} parent=1 // loop_exit
      _
    %620 = vsyncpa [#allocation3], 1
    %s621 = scalar_lea.sflag [#allocation3], 1
    %622 = vsyncpa %s621, 1
    %623 = vsyncpa [#allocation6], 1
    %624 = vsyncpa [#allocation10], 1
    %s625 = scalar_lea.sflag [#allocation10], 1
    %626 = vsyncpa %s625, 1
    %627 = vsyncpa [#allocation4], 1
    %s628 = scalar_lea.sflag [#allocation4], 1
    %629 = vsyncpa %s628, 1

</llo_original>
